<compile_context>
chip_gen: v5e
topology: v5e:2x2
jax: 0.10.0
libtpu: 0.0.40
codegen_flags: <defaults>
</compile_context>

<pallas_src>
import jax
import jax.numpy as jnp
from jax import lax
from jax.experimental import pallas as pl
from jax.experimental.pallas import tpu as pltpu


_TARGET_BLOCK_BYTES = 4 * 1024 * 1024  # ~4 MiB x-blocks: roofline plateau, few grid steps.


def _round_down(x, m):
    return (x // m) * m


def _round_up(x, m):
    return ((x + m - 1) // m) * m


def _vmem_limit_bytes():
    """Explicit scoped-VMEM limit: generous, but safe on v7x's 64 MiB physical VMEM."""
    try:
        cap = int(getattr(pltpu.get_tpu_info(), "vmem_capacity_bytes", 64 << 20))
    except Exception:
        cap = 64 << 20
    # Double-buffered working set is <= ~17 MiB; cap at half physical VMEM, max 48 MiB.
    return int(min(48 << 20, max(16 << 20, cap // 2)))


def _bn_kernel_row_params(x_ref, p_ref, o_ref):
    # x_ref: (TR, TC) tile of the (N*C, H*W) slab.
    # p_ref: (TR, 2) f32; lane 0 = scale, lane 1 = shift (broadcast across lanes).
    x = x_ref[...].astype(jnp.float32)
    scale = p_ref[:, 0:1]
    shift = p_ref[:, 1:2]
    o_ref[...] = (x * scale + shift).astype(o_ref.dtype)


def _bn_kernel_lane_params(x_ref, p_ref, o_ref):
    # x_ref: (TR, TC) tile of the (N, C*H*W) slab.
    # p_ref: (2, TC) f32; row 0 = scale, row 1 = shift (broadcast across sublanes).
    x = x_ref[...].astype(jnp.float32)
    scale = p_ref[0:1, :]
    shift = p_ref[1:2, :]
    o_ref[...] = (x * scale + shift).astype(o_ref.dtype)


def frozen_batch_norm_2d(x, weight, bias, running_mean, running_var, eps=1e-5):
    """x: (N, C, H, W); weight/bias/running_mean/running_var: (C,)."""
    n, c, h, w = x.shape
    hw = h * w
    itemsize = jnp.dtype(x.dtype).itemsize

    # Frozen-stats math in f32 (matches PyTorch, which keeps buffers in f32).
    w32 = weight.astype(jnp.float32)
    b32 = bias.astype(jnp.float32)
    rm32 = running_mean.astype(jnp.float32)
    rv32 = running_var.astype(jnp.float32)
    scale_c = w32 * lax.rsqrt(rv32 + jnp.float32(eps))  # (C,)
    shift_c = b32 - rm32 * scale_c                       # (C,)

    compiler_params = pltpu.CompilerParams(
        dimension_semantics=("parallel", "parallel"),
        vmem_limit_bytes=_vmem_limit_bytes(),
    )

    use_row_layout = (hw % 128 == 0) or (hw >= 2048)

    if use_row_layout:
        # ---------- Row layout: (N*C, H*W), one row per (sample, channel) ----------
        nc = n * c
        x2d = x.reshape(nc, hw)
        # n-major, c-minor rows — matches x.reshape order; pack scale/shift together.
        params = jnp.stack(
            [jnp.tile(scale_c, (n,)), jnp.tile(shift_c, (n,))], axis=-1
        )  # (NC, 2) f32

        # Lane tile: wide, 128-aligned (ragged last block is masked by Pallas).
        if hw % 128 == 0:
            tc = min(hw, 8192)
        else:  # hw >= 2048 here
            tc = min(_round_down(hw, 128), 8192)
        # Row tile: fill ~TARGET bytes per block, multiple of 8 (or full nc).
        tr = _TARGET_BLOCK_BYTES // (tc * itemsize)
        tr = min(max(8, _round_down(tr, 8)), 1024)
        if nc <= tr:
            tr = nc  # full extent is always a legal block dim

        grid = (pl.cdiv(nc, tr), pl.cdiv(hw, tc))
        out2d = pl.pallas_call(
            _bn_kernel_row_params,
            out_shape=jax.ShapeDtypeStruct((nc, hw), x.dtype),
            grid=grid,
            in_specs=[
                pl.BlockSpec((tr, tc), lambda i, j: (i, j)),   # x tile
                pl.BlockSpec((tr, 2), lambda i, j: (i, 0)),    # packed scale/shift
            ],
            out_specs=pl.BlockSpec((tr, tc), lambda i, j: (i, j)),
            compiler_params=compiler_params,
        )(x2d, params)
        return out2d.reshape(n, c, h, w)

    # ---------- Lane-dense layout: (N, C*H*W) for small / unaligned H*W ----------
    chw = c * hw
    x2d = x.reshape(n, chw)
    params = jnp.stack(
        [jnp.repeat(scale_c, hw), jnp.repeat(shift_c, hw)], axis=0
    )  # (2, CHW) f32

    tr = n if n <= 256 else 256          # full extent or multiple of 8
    tr_pad = _round_up(tr, 8)            # VMEM sublane padding for the byte budget
    tc = _TARGET_BLOCK_BYTES // (tr_pad * itemsize)
    tc = max(128, min(_round_down(tc, 128), 32768))
    if chw <= tc:
        tc = chw                         # full extent (legal even if not 128-aligned)

    grid = (pl.cdiv(n, tr), pl.cdiv(chw, tc))
    out2d = pl.pallas_call(
        _bn_kernel_lane_params,
        out_shape=jax.ShapeDtypeStruct((n, chw), x.dtype),
        grid=grid,
        in_specs=[
            pl.BlockSpec((tr, tc), lambda i, j: (i, j)),       # x tile
            pl.BlockSpec((2, tc), lambda i, j: (0, j)),        # packed scale/shift
        ],
        out_specs=pl.BlockSpec((tr, tc), lambda i, j: (i, j)),
        compiler_params=compiler_params,
    )(x2d, params)
    return out2d.reshape(n, c, h, w)


if __name__ == "__main__":
    def ref_fn(x, weight, bias, running_mean, running_var, eps):
        # Pure-JAX reference mirroring the PyTorch forward exactly.
        w4 = weight.reshape(1, -1, 1, 1).astype(jnp.float32)
        b4 = bias.reshape(1, -1, 1, 1).astype(jnp.float32)
        rv4 = running_var.reshape(1, -1, 1, 1).astype(jnp.float32)
        rm4 = running_mean.reshape(1, -1, 1, 1).astype(jnp.float32)
        scale = w4 * lax.rsqrt(rv4 + jnp.float32(eps))
        shift = b4 - rm4 * scale
        return (x.astype(jnp.float32) * scale + shift).astype(x.dtype)

    eps = 1e-5
    cases = [
        ((2, 4, 16, 16), jnp.float32),   # hw=256, 128-aligned       -> row layout
        ((2, 8, 7, 7), jnp.float32),     # hw=49, small & ragged     -> lane-dense layout
        ((1, 3, 40, 52), jnp.float32),   # hw=2080, ragged lane edge -> row layout, masked edge
        ((2, 4, 16, 16), jnp.bfloat16),  # bf16 streaming path
    ]

    base_key = jax.random.PRNGKey(0)
    for idx, (shape, dtype) in enumerate(cases):
        kx, kw, kb, km, kv = jax.random.split(jax.random.fold_in(base_key, idx), 5)
        n_, c_, h_, w_ = shape
        x = jax.random.normal(kx, shape, dtype=jnp.float32).astype(dtype)
        weight = 1.0 + 0.1 * jax.random.normal(kw, (c_,), dtype=jnp.float32)
        bias = 0.1 * jax.random.normal(kb, (c_,), dtype=jnp.float32)
        running_mean = 0.05 * jax.random.normal(km, (c_,), dtype=jnp.float32)
        running_var = 1.0 + 0.1 * jnp.abs(jax.random.normal(kv, (c_,), dtype=jnp.float32))

        out = frozen_batch_norm_2d(x, weight, bias, running_mean, running_var, eps)
        out = jax.block_until_ready(out)
        ref = ref_fn(x, weight, bias, running_mean, running_var, eps)

        assert out.shape == shape and out.dtype == dtype
        tol = 1e-5 if dtype == jnp.float32 else 2e-2
        assert jnp.allclose(out.astype(jnp.float32), ref.astype(jnp.float32),
                            atol=tol, rtol=tol), f"mismatch vs reference for {shape} {dtype}"

    print("KERNEL_OK")
</pallas_src>

<mosaic_0001>
module attributes {stable_mosaic.version = 11 : i64} {
  func.func @_bn_kernel_row_params(%arg0: i32, %arg1: i32, %arg2: memref<8x256xf32, #tpu.memory_space<vmem>>, %arg3: memref<8x2xf32, #tpu.memory_space<vmem>>, %arg4: memref<8x256xf32, #tpu.memory_space<vmem>>) attributes {dimension_semantics = [#tpu.dimension_semantics<parallel>, #tpu.dimension_semantics<parallel>], iteration_bounds = array<i64: 1, 1>, scalar_prefetch = 0 : i64, scratch_operands = 0 : i64, tpu.core_type = #tpu.core_type<tc>, window_params = [{transform_indices = @transform_0, window_bounds = array<i64: 8, 256>}, {transform_indices = @transform_1, window_bounds = array<i64: 8, 2>}, {transform_indices = @transform_2, window_bounds = array<i64: 8, 256>}]} {
    %c0 = arith.constant 0 : index
    %c0_0 = arith.constant 0 : index
    %0 = vector.load %arg2[%c0, %c0_0] : memref<8x256xf32, #tpu.memory_space<vmem>>, vector<8x256xf32>
    %c0_1 = arith.constant 0 : index
    %c0_2 = arith.constant 0 : index
    %1 = vector.load %arg3[%c0_1, %c0_2] : memref<8x2xf32, #tpu.memory_space<vmem>>, vector<8x1xf32>
    %c0_3 = arith.constant 0 : index
    %c1 = arith.constant 1 : index
    %2 = vector.load %arg3[%c0_3, %c1] : memref<8x2xf32, #tpu.memory_space<vmem>>, vector<8x1xf32>
    %3 = vector.broadcast %1 : vector<8x1xf32> to vector<8x256xf32>
    %4 = arith.mulf %0, %3 : vector<8x256xf32>
    %5 = vector.broadcast %2 : vector<8x1xf32> to vector<8x256xf32>
    %6 = arith.addf %4, %5 : vector<8x256xf32>
    %c0_4 = arith.constant 0 : index
    %c0_5 = arith.constant 0 : index
    %7 = vector.load %arg4[%c0_4, %c0_5] : memref<8x256xf32, #tpu.memory_space<vmem>>, vector<8x256xf32>
    tpu.vector_store %arg4[%c0_4, %c0_5], %6 {strides = array<i32>} : memref<8x256xf32, #tpu.memory_space<vmem>>, vector<8x256xf32>,
    return
  }
  func.func @transform_0(%arg0: i32, %arg1: i32) -> (i32, i32) {
    %c0_i32 = arith.constant 0 : i32
    return %arg0, %arg1 : i32, i32
  }
  func.func @transform_1(%arg0: i32, %arg1: i32) -> (i32, i32) {
    %c0_i32 = arith.constant 0 : i32
    %c0_i32_0 = arith.constant 0 : i32
    return %arg0, %c0_i32 : i32, i32
  }
  func.func @transform_2(%arg0: i32, %arg1: i32) -> (i32, i32) {
    %c0_i32 = arith.constant 0 : i32
    return %arg0, %arg1 : i32, i32
  }
}

</mosaic_0001>

<llo_original>
// kernel: tpu_custom_call.1
$region0: #{tpu_custom_call.1}
  #allocation0 [shape = 'u32[]', space=smem, size = 0x4, offset = 0x4, fixed_abs, tag = 'smem constant byte address 0x4 - core index']
  #allocation1 [shape = 'u32[72,128]{1,0:T(1,128)}', space=vmem, size = 0x9000, scoped, tag = 'internal scratch']
  %s0 = inlined_call_operand.hbm [shape: f32[8,256], index: 0, kind: input, shape index: {}]
  %s1 = inlined_call_operand.vmem [shape: f32[8,2], index: 1, kind: input, shape index: {}]
  %s2 = inlined_call_operand.hbm [shape: f32[8,256], index: 2, kind: output, shape index: {}]
  %s3 = sld [smem:[#allocation0]]
  $region22: #{tpu_custom_call.1} parent=0
    _
  %s5 = ssub.s32 1, %s3
  %s6 = scalar_select 0, %s5, %s3
  $region1: #{tpu_custom_call.1} parent=0
    #allocation2 [shape = 'u8[8192]{0}', space=vmem, size = 0x2000, scoped, tag = 'input window, operand 0, single buffered']
    #allocation3 [shape = 's32[1]{0}', space=sflag, size = 0x4, scoped, tag = 'scoped memory for tpu_custom_call.1']
    #allocation4 [shape = 's32[1]{0}', space=sflag, size = 0x4, scoped, tag = 'scoped memory for tpu_custom_call.1']
    #allocation5 [shape = 'u8[8192]{0}', space=vmem, size = 0x2000, scoped, tag = 'output window, operand 0, single buffered']
    %7 = vsyncpa [#allocation3], 0
    %8 = vsyncpa [#allocation4], 0
    // Predicated region
    $region2: #{tpu_custom_call.1} parent=1 // pred_check
      _
    $region3: #{tpu_custom_call.1} parent=1 // pred_check_branch
      %10 = sbr.rel (0) target = $region5
    $region4: #{tpu_custom_call.1} parent=1 // pred_region
      %12 = vsyncadd [#allocation3], 0
      %s14 = sshll.u32 %s0, 4
      %s15 = int_to_ptr.hbm [resolvable:$true] %s14
      %s16 = sshll.u32 [#allocation2], 4
      %s17 = int_to_ptr.vmem [resolvable:$true] %s16
      %19 = dma.hbm_to_vmem [thread:$0]  %s15, 256, %s17, [#allocation3]
    $region5: #{tpu_custom_call.1} parent=1 // pred_fallthru
      _
    // Predicated region
    $region6: #{tpu_custom_call.1} parent=1 // pred_check
      _
    $region7: #{tpu_custom_call.1} parent=1 // pred_check_branch
      %21 = sbr.rel (0) target = $region9
    $region8: #{tpu_custom_call.1} parent=1 // pred_region
      _
    $region9: #{tpu_custom_call.1} parent=1 // pred_fallthru
      _
    // Predicated region
    $region10: #{tpu_custom_call.1} parent=1 // pred_check
      _
    $region11: #{tpu_custom_call.1} parent=1 // pred_check_branch
      %23 = sbr.rel (0) target = $region13
    $region12: #{tpu_custom_call.1} parent=1 // pred_region
      %25 = dma.done [#allocation3], 256
    $region13: #{tpu_custom_call.1} parent=1 // pred_fallthru
      _
    %v26 = vld [vmem:[#allocation2] sm:$0xff]
    %v27 = vld [vmem:[#allocation2 + $0x8] sm:$0xff]
    %v28 = vld [vmem:[%s1] sm:$0xff]
    %30 = vset.pattern.permute.xlu0 0
    %31 = vperm.xlu0 %30, %v28
    %v32 = vpop.permute.xlu0 %31
    %v34 = vmul.f32 %v26, %v32
    %v35 = vmul.f32 %v27, %v32
    %36 = vset.pattern.permute.xlu0 1
    %37 = vperm.xlu0 %36, %v28
    %v38 = vpop.permute.xlu0 %37
    %v40 = vadd.f32 %v34, %v38
    %v41 = vadd.f32 %v35, %v38
    %42 = vst [vmem:[#allocation5] sm:$0xff] %v40
    %43 = vst [vmem:[#allocation5 + $0x8] sm:$0xff] %v41
    // Predicated region
    $region14: #{tpu_custom_call.1} parent=1 // pred_check
      _
    $region15: #{tpu_custom_call.1} parent=1 // pred_check_branch
      %45 = sbr.rel (0) target = $region17
    $region16: #{tpu_custom_call.1} parent=1 // pred_region
      %47 = vsyncadd [#allocation4], 0
      %s49 = sshll.u32 [#allocation5], 4
      %s50 = int_to_ptr.vmem [resolvable:$true] %s49
      %s51 = sshll.u32 %s2, 4
      %s52 = int_to_ptr.hbm [resolvable:$true] %s51
      %54 = dma.vmem_to_hbm [thread:$0]  %s50, 256, %s52, [#allocation4]
    $region17: #{tpu_custom_call.1} parent=1 // pred_fallthru
      _
    // Predicated region
    $region18: #{tpu_custom_call.1} parent=1 // pred_check
      _
    $region19: #{tpu_custom_call.1} parent=1 // pred_check_branch
      %56 = sbr.rel (0) target = $region21
    $region20: #{tpu_custom_call.1} parent=1 // pred_region
      %58 = dma.done [#allocation4], 256
    $region21: #{tpu_custom_call.1} parent=1 // pred_fallthru
      _
    %59 = vsyncpa [#allocation3], 1
    %60 = vsyncpa [#allocation4], 1

</llo_original>
